<compile_context>
chip_gen: v7x
topology: tpu7x:2x2x1
jax: 0.10.0
libtpu: 0.0.40
codegen_flags: <defaults>
</compile_context>

<pallas_src>
import functools

import jax
import jax.numpy as jnp
from jax.experimental import pallas as pl
from jax.experimental.pallas import tpu as pltpu


def _round_up(n, m):
    return ((n + m - 1) // m) * m


def _round_down(n, m):
    return (n // m) * m


def _pick_block_rows(rows, bytes_per_row, row_mult, vmem_budget_bytes):
    """Rows per grid step, sized from the double-buffered VMEM budget only.

    `bytes_per_row` must already be the *padded* per-row footprint of the logits
    block plus the lane-padded [TB, k] i32 target block.  When one tile would
    cover everything and there are enough rows, split into >= 2 tiles so the
    "parallel" batch axis can shard across both TensorCores on v7x.
    """
    if rows <= row_mult:
        return rows                                        # single full-extent block
    tb = vmem_budget_bytes // (2 * max(bytes_per_row, 1))  # 2 = double buffering
    tb = max(_round_down(tb, row_mult), row_mult)
    if tb >= rows:
        tb = _round_up(-(-rows // 2), row_mult)            # ceil(rows/2) -> >= 2 tiles
    return tb


def _ldam_ce_kernel(x_ref, tgt_ref, m_ref, psum_ref, *, s, seg_classes, segs,
                    valid_rows, block_rows):
    i = pl.program_id(0)
    C, K = seg_classes, segs
    s32 = jnp.float32(s)

    x = x_ref[...].astype(jnp.float32)      # [TB, K*C]  logits, streamed in native dtype
    tgt = tgt_ref[...]                      # [TB, K]    packed targets (i32)
    m = m_ref[...]                          # [1,  K*C]  per-class margins, tiled K times
    tb, W = x.shape

    # one-hot(target) in the packed layout: segment kk's target sits at global lane
    # kk*C + target, so a statically unrolled (K <= 16) iota compare builds it with
    # no div/mod and no gather.
    col = jax.lax.broadcasted_iota(jnp.int32, (tb, W), 1)
    onehot = col == tgt[:, 0:1]
    for kk in range(1, K):
        onehot = jnp.logical_or(onehot, col == (tgt[:, kk:kk + 1] + kk * C))

    # Fused margin math, lane-dense over the whole packed row.
    delta = x - m                                          # x_j - m_{j mod C}
    z = s32 * jnp.where(onehot, delta, x)                  # s * margin-adjusted logits
    zt_sel = jnp.where(onehot, delta, jnp.float32(0.0))    # target logit (pre-scale)

    # Ragged last tile: rows past the valid range hold unspecified data -> mask with
    # a select so NaN/Inf in the unselected branch cannot propagate.
    row = i * block_rows + jax.lax.broadcasted_iota(jnp.int32, (tb, 1), 0)
    row_ok = row < valid_rows

    # Per-example (= per C-wide lane segment) stable log-sum-exp + CE, reduced
    # straight into this tile's partial loss sum.
    tile_sum = jnp.float32(0.0)
    for kk in range(K):
        lo = kk * C
        z_kk = z[:, lo:lo + C]                                           # [TB, C]
        zmax = jnp.max(z_kk, axis=1, keepdims=True)                      # [TB, 1]
        sumexp = jnp.sum(jnp.exp(z_kk - zmax), axis=1, keepdims=True)    # [TB, 1]
        z_t = s32 * jnp.sum(zt_sel[:, lo:lo + C], axis=1, keepdims=True)
        per_ex = zmax + jnp.log(sumexp) - z_t                            # [TB, 1]
        tile_sum = tile_sum + jnp.sum(
            jnp.where(row_ok, per_ex, jnp.float32(0.0)))

    # Lane-dense, unmasked store of this tile's partial loss sum (broadcast over the
    # whole (1, 8, 128) output block; the consumer reads [i, 0, 0]).
    psum_ref[...] = jnp.broadcast_to(tile_sum, psum_ref.shape).astype(jnp.float32)


def ldam_loss(x, target, m_list, s=30.0, block_rows=None):
    """x: [B, C] logits (any float dtype), target: [B] int, m_list: [C]. Scalar f32.

    If `block_rows` is given it must be a multiple of 32 // x.dtype.itemsize (or equal
    the full packed-row count), otherwise lowering fails on the (8, 128) constraint.
    """
    B, C = x.shape

    # ---- lane packing for small class counts -------------------------------------
    k = 1
    if C < 128:
        for cand in range(min(16, 128 // C), 1, -1):
            if B % cand == 0:
                k = cand
                break
    rows, width = B // k, k * C

    x_p = x.reshape(rows, width)                           # contiguous reshape: no copy
    tgt_p = target.astype(jnp.int32).reshape(rows, k)
    m_f = m_list.astype(jnp.float32)
    m_p = (jnp.tile(m_f, k) if k > 1 else m_f).reshape(1, width)

    # ---- tile sizing from *padded* VMEM footprints --------------------------------
    itemsize = int(jnp.dtype(x.dtype).itemsize)
    row_mult = max(8, 32 // itemsize)                      # 8 f32 / 16 bf16 / 32 int8
    x_row_bytes = _round_up(width, 128) * itemsize         # logits block, lane-padded
    t_row_bytes = 128 * 4                                  # [TB, k] i32 lane-pads to 128
    bytes_per_row = x_row_bytes + t_row_bytes              # targets accounted explicitly

    try:
        vmem_cap = int(pltpu.get_tpu_info().vmem_capacity_bytes)
    except Exception:
        vmem_cap = 64 * 1024 * 1024                        # v7x per-TensorCore VMEM
    vmem_budget = min(vmem_cap // 2, 48 * 1024 * 1024)

    TB = (_pick_block_rows(rows, bytes_per_row, row_mult, vmem_budget)
          if block_rows is None else block_rows)
    num_tiles = pl.cdiv(rows, TB)

    compiler_kwargs = dict(dimension_semantics=("parallel",))
    resident = 2 * TB * bytes_per_row + 2 * (_round_up(width, 128) * 4 + 8 * 128 * 4)
    if resident > 12 * 1024 * 1024:
        # Beyond the most conservative default scoped-VMEM share (v5e): raise the
        # limit explicitly, staying well inside physical VMEM (v7x: 64 MiB/TC).
        compiler_kwargs["vmem_limit_bytes"] = int(
            min(vmem_cap * 7 // 8, resident + 16 * 1024 * 1024))

    cost = pl.CostEstimate(
        flops=int(8 * B * C),
        transcendentals=int(B * C + B),                    # exp over [B, C] + log over [B]
        bytes_accessed=int(B * C * itemsize + B * 4 + width * 4
                           + num_tiles * 8 * 128 * 4),
    )

    partials = pl.pallas_call(
        functools.partial(_ldam_ce_kernel, s=float(s), seg_classes=C, segs=k,
                          valid_rows=rows, block_rows=TB),
        out_shape=jax.ShapeDtypeStruct((num_tiles, 8, 128), jnp.float32),
        grid=(num_tiles,),
        in_specs=[
            pl.BlockSpec((TB, width), lambda i: (i, 0)),   # logits (native dtype)
            pl.BlockSpec((TB, k), lambda i: (i, 0)),       # packed targets
            pl.BlockSpec((1, width), lambda i: (0, 0)),    # tiled margins (broadcast)
        ],
        out_specs=pl.BlockSpec((1, 8, 128), lambda i: (i, 0, 0)),
        compiler_params=pltpu.CompilerParams(**compiler_kwargs),
        cost_estimate=cost,
    )(x_p, tgt_p, m_p)

    # Tiny final reduction + mean normalization.
    return partials[:, 0, 0].sum() * jnp.float32(1.0 / B)


def make_m_list(class_size_list, max_m=0.5):
    """Deterministic parameter setup, mirroring LDAMLoss.__init__."""
    counts = jnp.asarray(class_size_list, dtype=jnp.float32)
    m = 1.0 / jnp.sqrt(jnp.sqrt(counts))
    m = m * (max_m / jnp.max(m))
    return m.astype(jnp.float32)


def _reference_ldam_loss(x, target, m_list, s=30.0):
    # pure-JAX reference of the torch forward (weight=None), for a sanity check
    B, C = x.shape
    onehot = jax.nn.one_hot(target, C, dtype=jnp.float32)
    batch_m = (onehot * m_list[None, :]).sum(axis=1, keepdims=True)
    output = jnp.where(onehot > 0, x - batch_m, x)
    z = s * output
    logp = jax.nn.log_softmax(z, axis=1)
    return -jnp.mean(jnp.take_along_axis(logp, target[:, None], axis=1))


if __name__ == "__main__":
    root = jax.random.PRNGKey(0)
    keys = jax.random.split(root, 6)

    def run_case(kx, kt, B, C, dtype):
        class_sizes = jnp.array([1000 // (i + 1) + 1 for i in range(C)], jnp.float32)
        m_list = make_m_list(class_sizes, max_m=0.5)
        x = jax.random.normal(kx, (B, C), dtype=jnp.float32).astype(dtype)
        target = jax.random.randint(kt, (B,), 0, C, dtype=jnp.int32)
        loss = jax.block_until_ready(ldam_loss(x, target, m_list, s=30.0))
        ref = _reference_ldam_loss(x.astype(jnp.float32), target, m_list, s=30.0)
        assert jnp.allclose(loss, ref, rtol=1e-4, atol=1e-5), (B, C, dtype, loss, ref)

    # packed path (C=32 -> 4 examples per 128-lane row), single full-extent tile
    run_case(keys[0], keys[1], 8, 32, jnp.float32)
    # unpacked path (C > 128), bf16 logits streamed natively and upcast in-kernel
    run_case(keys[2], keys[3], 16, 136, jnp.bfloat16)
    # multi-tile packed path: 2-way tile split (megacore) + ragged last tile masking
    run_case(keys[4], keys[5], 200, 32, jnp.float32)

    print("KERNEL_OK")
</pallas_src>

<mosaic_0001>
module attributes {stable_mosaic.version = 11 : i64} {
  func.func @_ldam_ce_kernel(%arg0: i32, %arg1: memref<2x128xf32, #tpu.memory_space<vmem>>, %arg2: memref<2x4xi32, #tpu.memory_space<vmem>>, %arg3: memref<1x128xf32, #tpu.memory_space<vmem>>, %arg4: memref<1x8x128xf32, #tpu.memory_space<vmem>>) attributes {dimension_semantics = [#tpu.dimension_semantics<parallel>], iteration_bounds = array<i64: 1>, scalar_prefetch = 0 : i64, scratch_operands = 0 : i64, tpu.core_type = #tpu.core_type<tc>, window_params = [{transform_indices = @transform_0, window_bounds = array<i64: 2, 128>}, {transform_indices = @transform_1, window_bounds = array<i64: 2, 4>}, {pipeline_mode = #tpu.pipeline_mode<synchronous>, transform_indices = @transform_2, window_bounds = array<i64: 1, 128>}, {transform_indices = @transform_3, window_bounds = array<i64: 1, 8, 128>}]} {
    %c0 = arith.constant 0 : index
    %c0_0 = arith.constant 0 : index
    %0 = vector.load %arg1[%c0, %c0_0] : memref<2x128xf32, #tpu.memory_space<vmem>>, vector<2x128xf32>
    %c0_1 = arith.constant 0 : index
    %c0_2 = arith.constant 0 : index
    %1 = vector.load %arg2[%c0_1, %c0_2] : memref<2x4xi32, #tpu.memory_space<vmem>>, vector<2x4xi32>
    %c0_3 = arith.constant 0 : index
    %c0_4 = arith.constant 0 : index
    %2 = vector.load %arg3[%c0_3, %c0_4] : memref<1x128xf32, #tpu.memory_space<vmem>>, vector<1x128xf32>
    %3 = tpu.iota {dimensions = array<i32: 1>} : vector<2x128xi32>
    %4 = vector.extract_strided_slice %1 {offsets = [0, 0], sizes = [2, 1], strides = [1, 1]} : vector<2x4xi32> to vector<2x1xi32>
    %5 = vector.broadcast %4 : vector<2x1xi32> to vector<2x128xi32>
    %6 = arith.cmpi eq, %3, %5 : vector<2x128xi32>
    %7 = vector.extract_strided_slice %1 {offsets = [0, 1], sizes = [2, 1], strides = [1, 1]} : vector<2x4xi32> to vector<2x1xi32>
    %c32_i32 = arith.constant 32 : i32
    %8 = vector.broadcast %c32_i32 : i32 to vector<2x1xi32>
    %9 = arith.addi %7, %8 : vector<2x1xi32>
    %10 = vector.broadcast %9 : vector<2x1xi32> to vector<2x128xi32>
    %11 = arith.cmpi eq, %3, %10 : vector<2x128xi32>
    %12 = arith.ori %6, %11 : vector<2x128xi1>
    %13 = vector.extract_strided_slice %1 {offsets = [0, 2], sizes = [2, 1], strides = [1, 1]} : vector<2x4xi32> to vector<2x1xi32>
    %c64_i32 = arith.constant 64 : i32
    %14 = vector.broadcast %c64_i32 : i32 to vector<2x1xi32>
    %15 = arith.addi %13, %14 : vector<2x1xi32>
    %16 = vector.broadcast %15 : vector<2x1xi32> to vector<2x128xi32>
    %17 = arith.cmpi eq, %3, %16 : vector<2x128xi32>
    %18 = arith.ori %12, %17 : vector<2x128xi1>
    %19 = vector.extract_strided_slice %1 {offsets = [0, 3], sizes = [2, 1], strides = [1, 1]} : vector<2x4xi32> to vector<2x1xi32>
    %c96_i32 = arith.constant 96 : i32
    %20 = vector.broadcast %c96_i32 : i32 to vector<2x1xi32>
    %21 = arith.addi %19, %20 : vector<2x1xi32>
    %22 = vector.broadcast %21 : vector<2x1xi32> to vector<2x128xi32>
    %23 = arith.cmpi eq, %3, %22 : vector<2x128xi32>
    %24 = arith.ori %18, %23 : vector<2x128xi1>
    %25 = vector.broadcast %2 : vector<1x128xf32> to vector<2x128xf32>
    %26 = arith.subf %0, %25 : vector<2x128xf32>
    %27 = arith.select %24, %26, %0 : vector<2x128xi1>, vector<2x128xf32>
    %cst = arith.constant 3.000000e+01 : f32
    %28 = vector.broadcast %cst : f32 to vector<2x128xf32>
    %29 = arith.mulf %28, %27 : vector<2x128xf32>
    %cst_5 = arith.constant 0.000000e+00 : f32
    %30 = vector.broadcast %cst_5 : f32 to vector<2x128xf32>
    %31 = arith.select %24, %26, %30 : vector<2x128xi1>, vector<2x128xf32>
    %c2_i32 = arith.constant 2 : i32
    %32 = arith.muli %arg0, %c2_i32 : i32
    %33 = tpu.iota {dimensions = array<i32: 0>} : vector<2x1xi32>
    %34 = vector.broadcast %32 : i32 to vector<2x1xi32>
    %35 = arith.addi %34, %33 : vector<2x1xi32>
    %c2_i32_6 = arith.constant 2 : i32
    %36 = vector.broadcast %c2_i32_6 : i32 to vector<2x1xi32>
    %37 = arith.cmpi slt, %35, %36 : vector<2x1xi32>
    %38 = vector.extract_strided_slice %29 {offsets = [0, 0], sizes = [2, 32], strides = [1, 1]} : vector<2x128xf32> to vector<2x32xf32>
    %cst_7 = arith.constant dense<0xFF800000> : vector<2xf32>
    %39 = vector.multi_reduction <maximumf>, %38, %cst_7 [1] : vector<2x32xf32> to vector<2xf32>
    %40 = vector.shape_cast %39 : vector<2xf32> to vector<2x1xf32>
    %41 = vector.broadcast %40 : vector<2x1xf32> to vector<2x32xf32>
    %42 = arith.subf %38, %41 : vector<2x32xf32>
    %43 = math.exp %42 : vector<2x32xf32>
    %cst_8 = arith.constant dense<0.000000e+00> : vector<2xf32>
    %44 = vector.multi_reduction <add>, %43, %cst_8 [1] : vector<2x32xf32> to vector<2xf32>
    %45 = vector.shape_cast %44 : vector<2xf32> to vector<2x1xf32>
    %46 = vector.extract_strided_slice %31 {offsets = [0, 0], sizes = [2, 32], strides = [1, 1]} : vector<2x128xf32> to vector<2x32xf32>
    %cst_9 = arith.constant dense<0.000000e+00> : vector<2xf32>
    %47 = vector.multi_reduction <add>, %46, %cst_9 [1] : vector<2x32xf32> to vector<2xf32>
    %48 = vector.shape_cast %47 : vector<2xf32> to vector<2x1xf32>
    %cst_10 = arith.constant 3.000000e+01 : f32
    %49 = vector.broadcast %cst_10 : f32 to vector<2x1xf32>
    %50 = arith.mulf %49, %48 : vector<2x1xf32>
    %51 = math.log %45 : vector<2x1xf32>
    %52 = arith.addf %40, %51 : vector<2x1xf32>
    %53 = arith.subf %52, %50 : vector<2x1xf32>
    %cst_11 = arith.constant 0.000000e+00 : f32
    %54 = vector.broadcast %cst_11 : f32 to vector<2x1xf32>
    %55 = arith.select %37, %53, %54 : vector<2x1xi1>, vector<2x1xf32>
    %56 = vector.shape_cast %55 : vector<2x1xf32> to vector<1x2x1xf32>
    %cst_12 = arith.constant dense<0.000000e+00> : vector<1xf32>
    %57 = vector.multi_reduction <add>, %56, %cst_12 [1, 2] : vector<1x2x1xf32> to vector<1xf32>
    %58 = vector.shape_cast %57 : vector<1xf32> to vector<1x1x1xf32>
    %59 = vector.extract %58[0, 0, 0] : f32 from vector<1x1x1xf32>
    %cst_13 = arith.constant 0.000000e+00 : f32
    %60 = arith.addf %cst_13, %59 : f32
    %61 = vector.extract_strided_slice %29 {offsets = [0, 32], sizes = [2, 32], strides = [1, 1]} : vector<2x128xf32> to vector<2x32xf32>
    %cst_14 = arith.constant dense<0xFF800000> : vector<2xf32>
    %62 = vector.multi_reduction <maximumf>, %61, %cst_14 [1] : vector<2x32xf32> to vector<2xf32>
    %63 = vector.shape_cast %62 : vector<2xf32> to vector<2x1xf32>
    %64 = vector.broadcast %63 : vector<2x1xf32> to vector<2x32xf32>
    %65 = arith.subf %61, %64 : vector<2x32xf32>
    %66 = math.exp %65 : vector<2x32xf32>
    %cst_15 = arith.constant dense<0.000000e+00> : vector<2xf32>
    %67 = vector.multi_reduction <add>, %66, %cst_15 [1] : vector<2x32xf32> to vector<2xf32>
    %68 = vector.shape_cast %67 : vector<2xf32> to vector<2x1xf32>
    %69 = vector.extract_strided_slice %31 {offsets = [0, 32], sizes = [2, 32], strides = [1, 1]} : vector<2x128xf32> to vector<2x32xf32>
    %cst_16 = arith.constant dense<0.000000e+00> : vector<2xf32>
    %70 = vector.multi_reduction <add>, %69, %cst_16 [1] : vector<2x32xf32> to vector<2xf32>
    %71 = vector.shape_cast %70 : vector<2xf32> to vector<2x1xf32>
    %cst_17 = arith.constant 3.000000e+01 : f32
    %72 = vector.broadcast %cst_17 : f32 to vector<2x1xf32>
    %73 = arith.mulf %72, %71 : vector<2x1xf32>
    %74 = math.log %68 : vector<2x1xf32>
    %75 = arith.addf %63, %74 : vector<2x1xf32>
    %76 = arith.subf %75, %73 : vector<2x1xf32>
    %cst_18 = arith.constant 0.000000e+00 : f32
    %77 = vector.broadcast %cst_18 : f32 to vector<2x1xf32>
    %78 = arith.select %37, %76, %77 : vector<2x1xi1>, vector<2x1xf32>
    %79 = vector.shape_cast %78 : vector<2x1xf32> to vector<1x2x1xf32>
    %cst_19 = arith.constant dense<0.000000e+00> : vector<1xf32>
    %80 = vector.multi_reduction <add>, %79, %cst_19 [1, 2] : vector<1x2x1xf32> to vector<1xf32>
    %81 = vector.shape_cast %80 : vector<1xf32> to vector<1x1x1xf32>
    %82 = vector.extract %81[0, 0, 0] : f32 from vector<1x1x1xf32>
    %83 = arith.addf %60, %82 : f32
    %84 = vector.extract_strided_slice %29 {offsets = [0, 64], sizes = [2, 32], strides = [1, 1]} : vector<2x128xf32> to vector<2x32xf32>
    %cst_20 = arith.constant dense<0xFF800000> : vector<2xf32>
    %85 = vector.multi_reduction <maximumf>, %84, %cst_20 [1] : vector<2x32xf32> to vector<2xf32>
    %86 = vector.shape_cast %85 : vector<2xf32> to vector<2x1xf32>
    %87 = vector.broadcast %86 : vector<2x1xf32> to vector<2x32xf32>
    %88 = arith.subf %84, %87 : vector<2x32xf32>
    %89 = math.exp %88 : vector<2x32xf32>
    %cst_21 = arith.constant dense<0.000000e+00> : vector<2xf32>
    %90 = vector.multi_reduction <add>, %89, %cst_21 [1] : vector<2x32xf32> to vector<2xf32>
    %91 = vector.shape_cast %90 : vector<2xf32> to vector<2x1xf32>
    %92 = vector.extract_strided_slice %31 {offsets = [0, 64], sizes = [2, 32], strides = [1, 1]} : vector<2x128xf32> to vector<2x32xf32>
    %cst_22 = arith.constant dense<0.000000e+00> : vector<2xf32>
    %93 = vector.multi_reduction <add>, %92, %cst_22 [1] : vector<2x32xf32> to vector<2xf32>
    %94 = vector.shape_cast %93 : vector<2xf32> to vector<2x1xf32>
    %cst_23 = arith.constant 3.000000e+01 : f32
    %95 = vector.broadcast %cst_23 : f32 to vector<2x1xf32>
    %96 = arith.mulf %95, %94 : vector<2x1xf32>
    %97 = math.log %91 : vector<2x1xf32>
    %98 = arith.addf %86, %97 : vector<2x1xf32>
    %99 = arith.subf %98, %96 : vector<2x1xf32>
    %cst_24 = arith.constant 0.000000e+00 : f32
    %100 = vector.broadcast %cst_24 : f32 to vector<2x1xf32>
    %101 = arith.select %37, %99, %100 : vector<2x1xi1>, vector<2x1xf32>
    %102 = vector.shape_cast %101 : vector<2x1xf32> to vector<1x2x1xf32>
    %cst_25 = arith.constant dense<0.000000e+00> : vector<1xf32>
    %103 = vector.multi_reduction <add>, %102, %cst_25 [1, 2] : vector<1x2x1xf32> to vector<1xf32>
    %104 = vector.shape_cast %103 : vector<1xf32> to vector<1x1x1xf32>
    %105 = vector.extract %104[0, 0, 0] : f32 from vector<1x1x1xf32>
    %106 = arith.addf %83, %105 : f32
    %107 = vector.extract_strided_slice %29 {offsets = [0, 96], sizes = [2, 32], strides = [1, 1]} : vector<2x128xf32> to vector<2x32xf32>
    %cst_26 = arith.constant dense<0xFF800000> : vector<2xf32>
    %108 = vector.multi_reduction <maximumf>, %107, %cst_26 [1] : vector<2x32xf32> to vector<2xf32>
    %109 = vector.shape_cast %108 : vector<2xf32> to vector<2x1xf32>
    %110 = vector.broadcast %109 : vector<2x1xf32> to vector<2x32xf32>
    %111 = arith.subf %107, %110 : vector<2x32xf32>
    %112 = math.exp %111 : vector<2x32xf32>
    %cst_27 = arith.constant dense<0.000000e+00> : vector<2xf32>
    %113 = vector.multi_reduction <add>, %112, %cst_27 [1] : vector<2x32xf32> to vector<2xf32>
    %114 = vector.shape_cast %113 : vector<2xf32> to vector<2x1xf32>
    %115 = vector.extract_strided_slice %31 {offsets = [0, 96], sizes = [2, 32], strides = [1, 1]} : vector<2x128xf32> to vector<2x32xf32>
    %cst_28 = arith.constant dense<0.000000e+00> : vector<2xf32>
    %116 = vector.multi_reduction <add>, %115, %cst_28 [1] : vector<2x32xf32> to vector<2xf32>
    %117 = vector.shape_cast %116 : vector<2xf32> to vector<2x1xf32>
    %cst_29 = arith.constant 3.000000e+01 : f32
    %118 = vector.broadcast %cst_29 : f32 to vector<2x1xf32>
    %119 = arith.mulf %118, %117 : vector<2x1xf32>
    %120 = math.log %114 : vector<2x1xf32>
    %121 = arith.addf %109, %120 : vector<2x1xf32>
    %122 = arith.subf %121, %119 : vector<2x1xf32>
    %cst_30 = arith.constant 0.000000e+00 : f32
    %123 = vector.broadcast %cst_30 : f32 to vector<2x1xf32>
    %124 = arith.select %37, %122, %123 : vector<2x1xi1>, vector<2x1xf32>
    %125 = vector.shape_cast %124 : vector<2x1xf32> to vector<1x2x1xf32>
    %cst_31 = arith.constant dense<0.000000e+00> : vector<1xf32>
    %126 = vector.multi_reduction <add>, %125, %cst_31 [1, 2] : vector<1x2x1xf32> to vector<1xf32>
    %127 = vector.shape_cast %126 : vector<1xf32> to vector<1x1x1xf32>
    %128 = vector.extract %127[0, 0, 0] : f32 from vector<1x1x1xf32>
    %129 = arith.addf %106, %128 : f32
    %130 = vector.broadcast %129 : f32 to vector<1x8x128xf32>
    %c0_32 = arith.constant 0 : index
    %c0_33 = arith.constant 0 : index
    %c0_34 = arith.constant 0 : index
    %131 = vector.load %arg4[%c0_32, %c0_33, %c0_34] : memref<1x8x128xf32, #tpu.memory_space<vmem>>, vector<1x8x128xf32>
    tpu.vector_store %arg4[%c0_32, %c0_33, %c0_34], %130 {strides = array<i32>} : memref<1x8x128xf32, #tpu.memory_space<vmem>>, vector<1x8x128xf32>,
    return
  }
  func.func @transform_0(%arg0: i32) -> (i32, i32) {
    %c0_i32 = arith.constant 0 : i32
    %c0_i32_0 = arith.constant 0 : i32
    return %arg0, %c0_i32 : i32, i32
  }
  func.func @transform_1(%arg0: i32) -> (i32, i32) {
    %c0_i32 = arith.constant 0 : i32
    %c0_i32_0 = arith.constant 0 : i32
    return %arg0, %c0_i32 : i32, i32
  }
  func.func @transform_2(%arg0: i32) -> (i32, i32) {
    %c0_i32 = arith.constant 0 : i32
    %c0_i32_0 = arith.constant 0 : i32
    %c0_i32_1 = arith.constant 0 : i32
    return %c0_i32, %c0_i32_0 : i32, i32
  }
  func.func @transform_3(%arg0: i32) -> (i32, i32, i32) {
    %c0_i32 = arith.constant 0 : i32
    %c0_i32_0 = arith.constant 0 : i32
    %c0_i32_1 = arith.constant 0 : i32
    return %arg0, %c0_i32, %c0_i32_0 : i32, i32, i32
  }
}

</mosaic_0001>

<llo_original>
// kernel: tpu_custom_call.1
$region0: #{tpu_custom_call.1}
  #allocation0 [shape = 'u32[]', space=smem, size = 0x4, offset = 0x4, fixed_abs, tag = 'smem constant byte address 0x4 - core index']
  #allocation1 [shape = 'u32[144,128]{1,0:T(1,128)}', space=vmem, size = 0x12000, scoped, tag = 'internal scratch']
  %s0 = inlined_call_operand.hbm [shape: f32[2,128], index: 0, kind: input, shape index: {}]
  %s1 = inlined_call_operand.vmem [shape: s32[2,4], index: 1, kind: input, shape index: {}]
  %s2 = inlined_call_operand.vmem [shape: f32[1,128], index: 2, kind: input, shape index: {}]
  %s3 = inlined_call_operand.hbm [shape: f32[1,8,128], index: 3, kind: output, shape index: {}]
  %s4 = sld [smem:[#allocation0]]
  $region26: #{tpu_custom_call.1} parent=0
    _
  %s6 = ssub.s32 1, %s4
  %s7 = scalar_select 0, %s6, %s4
  $region1: #{tpu_custom_call.1} parent=0
    #allocation2 [shape = 'u8[1024]{0}', space=vmem, size = 0x400, scoped, tag = 'input window, operand 0, single buffered']
    #allocation3 [shape = 's32[1]{0}', space=sflag, size = 0x4, scoped, tag = 'scoped memory for tpu_custom_call.1']
    #allocation4 [shape = 's32[1]{0}', space=sflag, size = 0x4, scoped, tag = 'scoped memory for tpu_custom_call.1']
    #allocation5 [shape = 'u8[4096]{0}', space=vmem, size = 0x1000, scoped, tag = 'output window, operand 0, single buffered']
    %8 = vsyncpa [#allocation3], 0
    %9 = vsyncpa [#allocation4], 0
    // Predicated region
    $region2: #{tpu_custom_call.1} parent=1 // pred_check
      _
    $region3: #{tpu_custom_call.1} parent=1 // pred_check_branch
      %11 = sbr.rel (0) target = $region5
    $region4: #{tpu_custom_call.1} parent=1 // pred_region
      %s13 = ssub.s32 32, 32
      %14 = vsyncadd [#allocation3], %s13
      %s16 = sshll.u32 [#allocation2], 4
      %s17 = int_to_ptr.vmem [resolvable:$true] %s16
      %19 = dma.hbm_to_vmem [thread:$0]  %s0, 32, %s17, [#allocation3]
    $region5: #{tpu_custom_call.1} parent=1 // pred_fallthru
      _
    // Predicated region
    $region6: #{tpu_custom_call.1} parent=1 // pred_check
      _
    $region7: #{tpu_custom_call.1} parent=1 // pred_check_branch
      %21 = sbr.rel (0) target = $region9
    $region8: #{tpu_custom_call.1} parent=1 // pred_region
      _
    $region9: #{tpu_custom_call.1} parent=1 // pred_fallthru
      _
    // Predicated region
    $region10: #{tpu_custom_call.1} parent=1 // pred_check
      _
    $region11: #{tpu_custom_call.1} parent=1 // pred_check_branch
      %23 = sbr.rel (0) target = $region13
    $region12: #{tpu_custom_call.1} parent=1 // pred_region
      _
    $region13: #{tpu_custom_call.1} parent=1 // pred_fallthru
      _
    // Predicated region
    $region14: #{tpu_custom_call.1} parent=1 // pred_check
      _
    $region15: #{tpu_custom_call.1} parent=1 // pred_check_branch
      %25 = sbr.rel (0) target = $region17
    $region16: #{tpu_custom_call.1} parent=1 // pred_region
      %26 = dma.done [#allocation3], 32
    $region17: #{tpu_custom_call.1} parent=1 // pred_fallthru
      _
    %v27 = vld [vmem:[#allocation2] sm:$0x3]
    %v28 = vld [vmem:[%s1] sm:$0x3]
    %v29 = vld [vmem:[%s2] sm:$0x1]
    %v30 = vlaneseq
    %v31 = vand.u32 %v30, 127
    %32 = vset.pattern.permute.xlu0 0
    %33 = vperm.xlu0 %32, %v28
    %v34 = vpop.permute.xlu0 %33
    %vm35 = vcmp.eq.s32.totalorder %v31, %v34
    %v36 = vadd.s32 %v28, 32
    %37 = vset.pattern.permute.xlu0 1
    %38 = vperm.xlu0 %37, %v36
    %v39 = vpop.permute.xlu0 %38
    %vm40 = vcmp.eq.s32.totalorder %v31, %v39
    %vm41 = vmor %vm35, %vm40
    %v42 = vadd.s32 %v28, 64
    %43 = vset.pattern.permute.xlu0 2
    %44 = vperm.xlu0 %43, %v42
    %v45 = vpop.permute.xlu0 %44
    %vm46 = vcmp.eq.s32.totalorder %v31, %v45
    %vm47 = vmor %vm41, %vm46
    %v48 = vadd.s32 %v28, 96
    %49 = vset.pattern.permute.xlu0 3
    %50 = vperm.xlu0 %49, %v48
    %v51 = vpop.permute.xlu0 %50
    %vm52 = vcmp.eq.s32.totalorder %v31, %v51
    %vm53 = vmor %vm47, %vm52
    %v55 = vlaneseq
    %v56 = vshrl.u32 %v55, 7
    %v57 = vsub.s32 0, %v56
    %v58 = vrot.slane %v29, %v57
    %v60 = vsub.f32 %v27, %v58
    %v61 = vsel %vm53, %v60, %v27
    %v62 = vmul.f32 %v61, 30.0
    %v63 = vsel %vm53, %v60, 0.0
    %s64 = smul.u32 0, 2
    %v65 = vlaneseq
    %v66 = vshrl.u32 %v65, 7
    %v67 = vstv %s64
    %v68 = vadd.s32 %v67, %v66
    %vm69 = vcmp.lt.s32.totalorder %v68, 2
    %vm70 = vcmask 254976
    %v71 = vsel %vm70, %v62, -inf
    %72 = vmax.xlane.f32.xlu0 %v71
    %v73 = vpop.xlane.xlu0 %72
    %v74 = vsub.f32 %v62, %v73
    %v75 = vmul.f32 %v74, 1.442695
    %v76 = vpow.pop %v75
    %v77 = vsel %vm70, %v76, 0.0
    %78 = vadd.xlane.f32.xlu0 %v77
    %v79 = vpop.xlane.xlu0 %78
    %v80 = vsel %vm70, %v63, 0.0
    %81 = vadd.xlane.f32.xlu0 %v80
    %v82 = vpop.xlane.xlu0 %81
    %v83 = vmul.f32 %v82, 30.0
    %v84 = vlog2.pop %v79
    %v85 = vmul.f32 %v84, 0.6931472
    %v86 = vadd.f32 %v73, %v85
    %v87 = vsub.f32 %v86, %v83
    %v88 = vsel %vm69, %v87, 0.0
    %vm89 = vcmask 1024
    %v90 = vsel %vm89, %v88, 0.0
    %91 = vadd.xlane.f32.xlu0 %v90
    %v92 = vpop.xlane.xlu0 %91
    %v93 = vrot.slane %v92, 4
    %v94 = vadd.f32 %v92, %v93
    %v95 = vrot.slane %v94, 2
    %v96 = vadd.f32 %v94, %v95
    %v97 = vrot.slane %v96, 1
    %v98 = vadd.f32 %v96, %v97
    %s99 = vtos %v98
    %s100 = sadd.f32 %s99, 0.0
    %vm101 = vcmask 517376
    %v102 = vsel %vm101, %v62, -inf
    %103 = vmax.xlane.f32.xlu0 %v102
    %v104 = vpop.xlane.xlu0 %103
    %v105 = vsub.f32 %v62, %v104
    %v106 = vmul.f32 %v105, 1.442695
    %v107 = vpow.pop %v106
    %109 = vrot.lane.b32.xlu0 %v107, 96
    %v110 = vpop.permute.xlu0 %109
    %v112 = vsel %vm70, %v110, 0.0
    %113 = vadd.xlane.f32.xlu0 %v112
    %v114 = vpop.xlane.xlu0 %113
    %116 = vrot.lane.b32.xlu0 %v63, 96
    %v117 = vpop.permute.xlu0 %116
    %v119 = vsel %vm70, %v117, 0.0
    %120 = vadd.xlane.f32.xlu0 %v119
    %v121 = vpop.xlane.xlu0 %120
    %v122 = vmul.f32 %v121, 30.0
    %v123 = vlog2.pop %v114
    %v124 = vmul.f32 %v123, 0.6931472
    %v125 = vadd.f32 %v104, %v124
    %v126 = vsub.f32 %v125, %v122
    %v127 = vsel %vm69, %v126, 0.0
    %v128 = vsel %vm89, %v127, 0.0
    %129 = vadd.xlane.f32.xlu0 %v128
    %v130 = vpop.xlane.xlu0 %129
    %v131 = vrot.slane %v130, 4
    %v132 = vadd.f32 %v130, %v131
    %v133 = vrot.slane %v132, 2
    %v134 = vadd.f32 %v132, %v133
    %v135 = vrot.slane %v134, 1
    %v136 = vadd.f32 %v134, %v135
    %s137 = vtos %v136
    %s138 = sadd.f32 %s100, %s137
    %vm139 = vcmask 779776
    %v140 = vsel %vm139, %v62, -inf
    %141 = vmax.xlane.f32.xlu0 %v140
    %v142 = vpop.xlane.xlu0 %141
    %v143 = vsub.f32 %v62, %v142
    %v144 = vmul.f32 %v143, 1.442695
    %v145 = vpow.pop %v144
    %147 = vrot.lane.b32.xlu0 %v145, 64
    %v148 = vpop.permute.xlu0 %147
    %v150 = vsel %vm70, %v148, 0.0
    %151 = vadd.xlane.f32.xlu0 %v150
    %v152 = vpop.xlane.xlu0 %151
    %153 = vrot.lane.b32.xlu0 %v63, 64
    %v154 = vpop.permute.xlu0 %153
    %v156 = vsel %vm70, %v154, 0.0
    %157 = vadd.xlane.f32.xlu0 %v156
    %v158 = vpop.xlane.xlu0 %157
    %v159 = vmul.f32 %v158, 30.0
    %v160 = vlog2.pop %v152
    %v161 = vmul.f32 %v160, 0.6931472
    %v162 = vadd.f32 %v142, %v161
    %v163 = vsub.f32 %v162, %v159
    %v164 = vsel %vm69, %v163, 0.0
    %v165 = vsel %vm89, %v164, 0.0
    %166 = vadd.xlane.f32.xlu0 %v165
    %v167 = vpop.xlane.xlu0 %166
    %v168 = vrot.slane %v167, 4
    %v169 = vadd.f32 %v167, %v168
    %v170 = vrot.slane %v169, 2
    %v171 = vadd.f32 %v169, %v170
    %v172 = vrot.slane %v171, 1
    %v173 = vadd.f32 %v171, %v172
    %s174 = vtos %v173
    %s175 = sadd.f32 %s138, %s174
    %vm176 = vcmask 1042176
    %v177 = vsel %vm176, %v62, -inf
    %178 = vmax.xlane.f32.xlu0 %v177
    %v179 = vpop.xlane.xlu0 %178
    %v180 = vsub.f32 %v62, %v179
    %v181 = vmul.f32 %v180, 1.442695
    %v182 = vpow.pop %v181
    %184 = vrot.lane.b32.xlu0 %v182, 32
    %v185 = vpop.permute.xlu0 %184
    %v187 = vsel %vm70, %v185, 0.0
    %188 = vadd.xlane.f32.xlu0 %v187
    %v189 = vpop.xlane.xlu0 %188
    %190 = vrot.lane.b32.xlu0 %v63, 32
    %v191 = vpop.permute.xlu0 %190
    %v193 = vsel %vm70, %v191, 0.0
    %194 = vadd.xlane.f32.xlu0 %v193
    %v195 = vpop.xlane.xlu0 %194
    %v196 = vmul.f32 %v195, 30.0
    %v197 = vlog2.pop %v189
    %v198 = vmul.f32 %v197, 0.6931472
    %v199 = vadd.f32 %v179, %v198
    %v200 = vsub.f32 %v199, %v196
    %v201 = vsel %vm69, %v200, 0.0
    %v202 = vsel %vm89, %v201, 0.0
    %203 = vadd.xlane.f32.xlu0 %v202
    %v204 = vpop.xlane.xlu0 %203
    %v205 = vrot.slane %v204, 4
    %v206 = vadd.f32 %v204, %v205
    %v207 = vrot.slane %v206, 2
    %v208 = vadd.f32 %v206, %v207
    %v209 = vrot.slane %v208, 1
    %v210 = vadd.f32 %v208, %v209
    %s211 = vtos %v210
    %s212 = sadd.f32 %s175, %s211
    %v213 = vstv %s212
    %214 = vst [vmem:[#allocation5] sm:$0xff] %v213
    // Predicated region
    $region18: #{tpu_custom_call.1} parent=1 // pred_check
      _
    $region19: #{tpu_custom_call.1} parent=1 // pred_check_branch
      %216 = sbr.rel (0) target = $region21
    $region20: #{tpu_custom_call.1} parent=1 // pred_region
      %s218 = ssub.s32 128, 128
      %219 = vsyncadd [#allocation4], %s218
      %s221 = sshll.u32 [#allocation5], 4
      %s222 = int_to_ptr.vmem [resolvable:$true] %s221
      %224 = dma.vmem_to_hbm [thread:$0]  %s222, 128, %s3, [#allocation4]
    $region21: #{tpu_custom_call.1} parent=1 // pred_fallthru
      _
    // Predicated region
    $region22: #{tpu_custom_call.1} parent=1 // pred_check
      _
    $region23: #{tpu_custom_call.1} parent=1 // pred_check_branch
      %226 = sbr.rel (0) target = $region25
    $region24: #{tpu_custom_call.1} parent=1 // pred_region
      %227 = dma.done [#allocation4], 128
    $region25: #{tpu_custom_call.1} parent=1 // pred_fallthru
      _
    %228 = vsyncpa [#allocation3], 1
    %229 = vsyncpa [#allocation4], 1

</llo_original>
